<compile_context>
chip_gen: v7x
topology: tpu7x:2x2x1
jax: 0.10.0
libtpu: 0.0.40
codegen_flags: <defaults>
</compile_context>

<pallas_src>
import functools

import jax
import jax.numpy as jnp
from jax.experimental import pallas as pl
from jax.experimental.pallas import tpu as pltpu


def _round_up(x, m):
    return ((x + m - 1) // m) * m


_VMEM_BUDGET_BYTES = 20 * 1024 * 1024   # resident budget used for Bt selection
_VMEM_LIMIT_BYTES = 32 * 1024 * 1024    # explicit scoped VMEM limit (safe on v5e/v6e/v7x)


def soft_attention_kernel(x_ref, w_ref, b_ref, uw_ref, out_ref):
    """One batch tile of soft attention.

    x_ref : (Bt, S, D)   inputs (original feature dim, not padded)
    w_ref : (D, Dp)      w_omega weight, (in, out) layout, out dim padded to 128
    b_ref : (1, Dp)      w_omega bias (zero-padded)
    uw_ref: (1, Dp)      u_omega weight row (zero-padded)
    out_ref:(Bt, D)      pooled features
    """
    Bt, S, D = x_ref.shape

    # ---- u = tanh(x @ W + b): one big (Bt*S, D) x (D, Dp) MXU matmul, f32 acc.
    x = x_ref[...]                                   # (Bt, S, D), input dtype
    xf = x.reshape(Bt * S, D)
    u = jnp.tanh(
        jnp.dot(xf, w_ref[...], preferred_element_type=jnp.float32)
        + b_ref[...].astype(jnp.float32)
    )                                                # (Bt*S, Dp) f32

    # ---- att[b, s] = <u[b, s, :], u_omega>: VPU multiply + lane reduce. ----
    att = jnp.sum(u * uw_ref[...].astype(jnp.float32), axis=-1, keepdims=True)
    att = att.reshape(Bt, S, 1)                      # sequence axis on sublanes

    # ---- softmax over the sequence axis (exact divide; denom is tiny). ----
    m = jnp.max(att, axis=1, keepdims=True)
    e = jnp.exp(att - m)
    score = e / jnp.sum(e, axis=1, keepdims=True)    # (Bt, S, 1) f32

    # ---- pooled[b, :] = sum_s score[b, s] * x[b, s, :] --------------------
    # VPU broadcast-multiply + sublane reduce (S is small): keeps the MXU free
    # and avoids materializing an f32 copy of x; f32 accumulation in the sum.
    x2 = x_ref[...]                                  # re-read: shorter live range
    pooled = jnp.sum(x2 * score.astype(x2.dtype), axis=1, dtype=jnp.float32)
    out_ref[...] = pooled.astype(out_ref.dtype)      # (Bt, D)


def _choose_block_b(B, S, D, Dp, x_itemsize, w_itemsize):
    """Largest batch tile whose full VMEM footprint fits the budget, capped so
    the 'parallel' batch axis keeps >= 2 grid steps (both v7x TensorCores)."""
    if B <= 8:
        return B                      # single step; block equals the full batch dim
    per_bt = (
        2 * S * D * x_itemsize        # x block, double-buffered
        + 2 * D * x_itemsize          # out block, double-buffered
        + 2 * S * Dp * 4              # u and elementwise f32 temporaries
        + S * D * 4                   # scored product / f32 reduce temp
    )
    const = 2 * D * Dp * w_itemsize + 4 * Dp * w_itemsize  # W, bias, u_omega buffers
    avail = _VMEM_BUDGET_BYTES - const
    if avail <= per_bt * 8:
        return 8
    bt = (avail // per_bt) // 8 * 8
    cap = max(8, _round_up((B + 1) // 2, 8))          # keep >= 2 grid steps
    return int(max(8, min(bt, cap)))


@functools.partial(jax.jit, static_argnames=("block_b",))
def soft_attention(x, w_omega_w, w_omega_b, u_omega_w, *, block_b=None):
    """x: (B, S, D); w_omega_w: (D, D) PyTorch (out, in); w_omega_b: (D,);
    u_omega_w: (1, D). Returns (B, D)."""
    B, S, D = x.shape
    Dp = _round_up(D, 128)

    # Pad only the (small) parameters to a lane-dense output feature dim; the
    # (large) x tensor stays untouched in HBM.
    w_t = w_omega_w.T                                  # (in=D, out=D)
    if Dp != D:
        w_p = jnp.pad(w_t, ((0, 0), (0, Dp - D)))
        b_p = jnp.pad(w_omega_b, (0, Dp - D)).reshape(1, Dp)
        uw_p = jnp.pad(u_omega_w.reshape(1, D), ((0, 0), (0, Dp - D)))
    else:
        w_p = w_t
        b_p = w_omega_b.reshape(1, Dp)
        uw_p = u_omega_w.reshape(1, Dp)

    if block_b is None:
        block_b = _choose_block_b(B, S, D, Dp, x.dtype.itemsize, w_p.dtype.itemsize)
    Bt = int(block_b)

    if Bt >= B:
        Bt, Bp, x_in = B, B, x                         # block == full batch dim
    else:
        Bt = max(8, (Bt // 8) * 8)                     # sublane-aligned out block
        Bp = _round_up(B, Bt)
        x_in = jnp.pad(x, ((0, Bp - B), (0, 0), (0, 0))) if Bp != B else x

    out = pl.pallas_call(
        soft_attention_kernel,
        out_shape=jax.ShapeDtypeStruct((Bp, D), x.dtype),
        grid_spec=pltpu.PrefetchScalarGridSpec(
            num_scalar_prefetch=0,
            grid=(Bp // Bt,),
            in_specs=[
                pl.BlockSpec((Bt, S, D), lambda i: (i, 0, 0)),
                # TODO(synk): mark these grid-invariant operands single-buffered
                # (pipeline_mode=pl.Buffered(1)) once verified on all targets.
                pl.BlockSpec((D, Dp), lambda i: (0, 0)),
                pl.BlockSpec((1, Dp), lambda i: (0, 0)),
                pl.BlockSpec((1, Dp), lambda i: (0, 0)),
            ],
            out_specs=pl.BlockSpec((Bt, D), lambda i: (i, 0)),
        ),
        compiler_params=pltpu.CompilerParams(
            dimension_semantics=("parallel",),
            vmem_limit_bytes=_VMEM_LIMIT_BYTES,
        ),
    )(x_in, w_p, b_p, uw_p)

    return out[:B] if Bp != B else out


def soft_attention_ref(x, w_omega_w, w_omega_b, u_omega_w):
    u = jnp.tanh(jnp.einsum("bsd,od->bso", x, w_omega_w) + w_omega_b)
    att = jnp.einsum("bso,lo->bsl", u, u_omega_w)          # (B, S, 1)
    score = jax.nn.softmax(att, axis=1)
    return jnp.sum(x * score, axis=1)


if __name__ == "__main__":
    num_hiddens = 32
    B, S, D = 2, 8, 2 * num_hiddens   # D = 64

    key = jax.random.PRNGKey(0)
    kx, kw, kb, ku = jax.random.split(key, 4)

    x = jax.random.normal(kx, (B, S, D), dtype=jnp.float32)
    # deterministic synthetic parameters (PyTorch Linear shapes)
    w_omega_w = jax.random.normal(kw, (D, D), dtype=jnp.float32) * 0.1   # (out, in)
    w_omega_b = jax.random.normal(kb, (D,), dtype=jnp.float32) * 0.1
    u_omega_w = jax.random.normal(ku, (1, D), dtype=jnp.float32) * 0.1   # (out=1, in)

    out = soft_attention(x, w_omega_w, w_omega_b, u_omega_w)
    out = jax.block_until_ready(out)

    ref = soft_attention_ref(x, w_omega_w, w_omega_b, u_omega_w)
    assert out.shape == (B, D)
    err = jnp.max(jnp.abs(out - ref))
    assert jnp.allclose(out, ref, atol=2e-3, rtol=2e-3), f"max abs err {err}"
    print("KERNEL_OK")
</pallas_src>

<mosaic_0001>
module attributes {stable_mosaic.version = 11 : i64} {
  func.func @soft_attention_kernel(%arg0: i32, %arg1: memref<2x8x64xf32, #tpu.memory_space<vmem>>, %arg2: memref<64x128xf32, #tpu.memory_space<vmem>>, %arg3: memref<1x128xf32, #tpu.memory_space<vmem>>, %arg4: memref<1x128xf32, #tpu.memory_space<vmem>>, %arg5: memref<2x64xf32, #tpu.memory_space<vmem>>) attributes {dimension_semantics = [#tpu.dimension_semantics<parallel>], iteration_bounds = array<i64: 1>, scalar_prefetch = 0 : i64, scratch_operands = 0 : i64, tpu.core_type = #tpu.core_type<tc>, window_params = [{transform_indices = @transform_0, window_bounds = array<i64: 2, 8, 64>}, {pipeline_mode = #tpu.pipeline_mode<synchronous>, transform_indices = @transform_1, window_bounds = array<i64: 64, 128>}, {pipeline_mode = #tpu.pipeline_mode<synchronous>, transform_indices = @transform_2, window_bounds = array<i64: 1, 128>}, {pipeline_mode = #tpu.pipeline_mode<synchronous>, transform_indices = @transform_3, window_bounds = array<i64: 1, 128>}, {transform_indices = @transform_4, window_bounds = array<i64: 2, 64>}]} {
    %c0 = arith.constant 0 : index
    %c0_0 = arith.constant 0 : index
    %c0_1 = arith.constant 0 : index
    %0 = vector.load %arg1[%c0, %c0_0, %c0_1] : memref<2x8x64xf32, #tpu.memory_space<vmem>>, vector<2x8x64xf32>
    %1 = vector.shape_cast %0 : vector<2x8x64xf32> to vector<16x64xf32>
    %c0_2 = arith.constant 0 : index
    %c0_3 = arith.constant 0 : index
    %2 = vector.load %arg2[%c0_2, %c0_3] : memref<64x128xf32, #tpu.memory_space<vmem>>, vector<64x128xf32>
    %cst = arith.constant dense<0.000000e+00> : vector<16x128xf32>
    %3 = tpu.matmul %1, %2, %cst {dimension_numbers = #tpu.dot_dimension_numbers<[1], [0], [0], [1], [0, 0, 1, 1], [], []>} : vector<16x64xf32>, vector<64x128xf32>, vector<16x128xf32> -> vector<16x128xf32>
    %c0_4 = arith.constant 0 : index
    %c0_5 = arith.constant 0 : index
    %4 = vector.load %arg3[%c0_4, %c0_5] : memref<1x128xf32, #tpu.memory_space<vmem>>, vector<1x128xf32>
    %5 = vector.broadcast %4 : vector<1x128xf32> to vector<16x128xf32>
    %6 = arith.addf %3, %5 : vector<16x128xf32>
    %7 = math.tanh %6 : vector<16x128xf32>
    %c0_6 = arith.constant 0 : index
    %c0_7 = arith.constant 0 : index
    %8 = vector.load %arg4[%c0_6, %c0_7] : memref<1x128xf32, #tpu.memory_space<vmem>>, vector<1x128xf32>
    %9 = vector.broadcast %8 : vector<1x128xf32> to vector<16x128xf32>
    %10 = arith.mulf %7, %9 : vector<16x128xf32>
    %cst_8 = arith.constant dense<0.000000e+00> : vector<16xf32>
    %11 = vector.multi_reduction <add>, %10, %cst_8 [1] : vector<16x128xf32> to vector<16xf32>
    %12 = vector.shape_cast %11 : vector<16xf32> to vector<16x1xf32>
    %13 = vector.shape_cast %12 : vector<16x1xf32> to vector<2x8x1xf32>
    %cst_9 = arith.constant dense<0xFF800000> : vector<2x1xf32>
    %14 = vector.multi_reduction <maximumf>, %13, %cst_9 [1] : vector<2x8x1xf32> to vector<2x1xf32>
    %15 = vector.shape_cast %14 : vector<2x1xf32> to vector<2x1x1xf32>
    %16 = vector.broadcast %15 : vector<2x1x1xf32> to vector<2x8x1xf32>
    %17 = arith.subf %13, %16 : vector<2x8x1xf32>
    %18 = math.exp %17 : vector<2x8x1xf32>
    %cst_10 = arith.constant dense<0.000000e+00> : vector<2x1xf32>
    %19 = vector.multi_reduction <add>, %18, %cst_10 [1] : vector<2x8x1xf32> to vector<2x1xf32>
    %20 = vector.shape_cast %19 : vector<2x1xf32> to vector<2x1x1xf32>
    %21 = vector.broadcast %20 : vector<2x1x1xf32> to vector<2x8x1xf32>
    %22 = arith.divf %18, %21 : vector<2x8x1xf32>
    %c0_11 = arith.constant 0 : index
    %c0_12 = arith.constant 0 : index
    %c0_13 = arith.constant 0 : index
    %23 = vector.load %arg1[%c0_11, %c0_12, %c0_13] : memref<2x8x64xf32, #tpu.memory_space<vmem>>, vector<2x8x64xf32>
    %24 = vector.broadcast %22 : vector<2x8x1xf32> to vector<2x8x64xf32>
    %25 = arith.mulf %23, %24 : vector<2x8x64xf32>
    %cst_14 = arith.constant dense<0.000000e+00> : vector<2x64xf32>
    %26 = vector.multi_reduction <add>, %25, %cst_14 [1] : vector<2x8x64xf32> to vector<2x64xf32>
    %c0_15 = arith.constant 0 : index
    %c0_16 = arith.constant 0 : index
    %27 = vector.load %arg5[%c0_15, %c0_16] : memref<2x64xf32, #tpu.memory_space<vmem>>, vector<2x64xf32>
    tpu.vector_store %arg5[%c0_15, %c0_16], %26 {strides = array<i32>} : memref<2x64xf32, #tpu.memory_space<vmem>>, vector<2x64xf32>,
    return
  }
  func.func @transform_0(%arg0: i32) -> (i32, i32, i32) {
    %c0_i32 = arith.constant 0 : i32
    %c0_i32_0 = arith.constant 0 : i32
    %c0_i32_1 = arith.constant 0 : i32
    return %arg0, %c0_i32, %c0_i32_0 : i32, i32, i32
  }
  func.func @transform_1(%arg0: i32) -> (i32, i32) {
    %c0_i32 = arith.constant 0 : i32
    %c0_i32_0 = arith.constant 0 : i32
    %c0_i32_1 = arith.constant 0 : i32
    return %c0_i32, %c0_i32_0 : i32, i32
  }
  func.func @transform_2(%arg0: i32) -> (i32, i32) {
    %c0_i32 = arith.constant 0 : i32
    %c0_i32_0 = arith.constant 0 : i32
    %c0_i32_1 = arith.constant 0 : i32
    return %c0_i32, %c0_i32_0 : i32, i32
  }
  func.func @transform_3(%arg0: i32) -> (i32, i32) {
    %c0_i32 = arith.constant 0 : i32
    %c0_i32_0 = arith.constant 0 : i32
    %c0_i32_1 = arith.constant 0 : i32
    return %c0_i32, %c0_i32_0 : i32, i32
  }
  func.func @transform_4(%arg0: i32) -> (i32, i32) {
    %c0_i32 = arith.constant 0 : i32
    %c0_i32_0 = arith.constant 0 : i32
    return %arg0, %c0_i32 : i32, i32
  }
}

</mosaic_0001>

<llo_original>
// kernel: soft_attention.1
$region0: #{soft_attention.1}
  #allocation0 [shape = 'u32[]', space=smem, size = 0x4, offset = 0x4, fixed_abs, tag = 'smem constant byte address 0x4 - core index']
  #allocation1 [shape = 'u32[144,128]{1,0:T(1,128)}', space=vmem, size = 0x12000, scoped, tag = 'internal scratch']
  %s0 = inlined_call_operand.vmem [shape: f32[2,8,64], index: 0, kind: input, shape index: {}]
  %s1 = inlined_call_operand.vmem [shape: f32[64,128], index: 1, kind: input, shape index: {}]
  %s2 = inlined_call_operand.vmem [shape: f32[1,128], index: 2, kind: input, shape index: {}]
  %s3 = inlined_call_operand.vmem [shape: f32[1,128], index: 3, kind: input, shape index: {}]
  %s4 = inlined_call_operand.hbm [shape: f32[2,64], index: 4, kind: output, shape index: {}]
  %s5 = sld [smem:[#allocation0]]
  $region26: #{soft_attention.1} parent=0
    _
  %s7 = ssub.s32 1, %s5
  %s8 = scalar_select 0, %s7, %s5
  $region1: #{soft_attention.1} parent=0
    #allocation2 [shape = 'u8[1024]{0}', space=vmem, size = 0x400, scoped, tag = 'output window, operand 0, single buffered']
    #allocation3 [shape = 's32[1]{0}', space=sflag, size = 0x4, scoped, tag = 'scoped memory for soft_attention.1']
    %9 = vsyncpa [#allocation3], 0
    // Predicated region
    $region2: #{soft_attention.1} parent=1 // pred_check
      _
    $region3: #{soft_attention.1} parent=1 // pred_check_branch
      %11 = sbr.rel (0) target = $region5
    $region4: #{soft_attention.1} parent=1 // pred_region
      _
    $region5: #{soft_attention.1} parent=1 // pred_fallthru
      _
    // Predicated region
    $region6: #{soft_attention.1} parent=1 // pred_check
      _
    $region7: #{soft_attention.1} parent=1 // pred_check_branch
      %13 = sbr.rel (0) target = $region9
    $region8: #{soft_attention.1} parent=1 // pred_region
      _
    $region9: #{soft_attention.1} parent=1 // pred_fallthru
      _
    // Predicated region
    $region10: #{soft_attention.1} parent=1 // pred_check
      _
    $region11: #{soft_attention.1} parent=1 // pred_check_branch
      %15 = sbr.rel (0) target = $region13
    $region12: #{soft_attention.1} parent=1 // pred_region
      _
    $region13: #{soft_attention.1} parent=1 // pred_fallthru
      _
    // Predicated region
    $region14: #{soft_attention.1} parent=1 // pred_check
      _
    $region15: #{soft_attention.1} parent=1 // pred_check_branch
      %17 = sbr.rel (0) target = $region17
    $region16: #{soft_attention.1} parent=1 // pred_region
      _
    $region17: #{soft_attention.1} parent=1 // pred_fallthru
      _
    %v18 = vld [vmem:[%s0] sm:$0xff]
    %v19 = vld [vmem:[%s0 + $0x8] sm:$0xff]
    %v20 = vld [vmem:[%s1] sm:$0xff]
    %v21 = vld [vmem:[%s1 + $0x8] sm:$0xff]
    %v22 = vld [vmem:[%s1 + $0x10] sm:$0xff]
    %v23 = vld [vmem:[%s1 + $0x18] sm:$0xff]
    %v24 = vld [vmem:[%s1 + $0x20] sm:$0xff]
    %v25 = vld [vmem:[%s1 + $0x28] sm:$0xff]
    %v26 = vld [vmem:[%s1 + $0x30] sm:$0xff]
    %v27 = vld [vmem:[%s1 + $0x38] sm:$0xff]
    %v28 = vld [vmem:[%s2] sm:$0x1]
    %v30 = vlaneseq
    %v31 = vshrl.u32 %v30, 7
    %v32 = vsub.s32 0, %v31
    %v33 = vrot.slane %v28, %v32
    %vm35 = vcmask 523264
    %v37 = vsel %vm35, %v18, 0
    %v40 = vsel %vm35, %v19, 0
    %42 = vmatprep.subr.mxu0 0.0
    %43 = vmatpush1.msra.mxu0 %v20
    %44 = vmatprep.subr.mxu0 0.0
    %45 = vmatpush1.msra.mxu0 %v21
    %46 = vmatprep.subr.mxu0 0.0
    %47 = vmatpush1.msra.mxu0 %v22
    %48 = vmatprep.subr.mxu0 0.0
    %49 = vmatpush1.msra.mxu0 %v23
    %50 = vmatprep.subr.mxu0 0.0
    %51 = vmatpush1.msra.mxu0 %v24
    %52 = vmatprep.subr.mxu0 0.0
    %53 = vmatpush1.msra.mxu0 %v25
    %54 = vmatprep.subr.mxu0 0.0
    %55 = vmatpush1.msra.mxu0 %v26
    %56 = vmatprep.subr.mxu0 0.0
    %57 = vmatpush1.msra.mxu0 %v27
    %58 = vmatprep.subr.mxu0 0.0
    %59 = vmatpush1.msra.mxu0 0.0
    %60 = vmatprep.subr.mxu0 0.0
    %61 = vmatpush1.msra.mxu0 0.0
    %62 = vmatprep.subr.mxu0 0.0
    %63 = vmatpush1.msra.mxu0 0.0
    %64 = vmatprep.subr.mxu0 0.0
    %65 = vmatpush1.msra.mxu0 0.0
    %66 = vmatprep.subr.mxu0 0.0
    %67 = vmatpush1.msra.mxu0 0.0
    %68 = vmatprep.subr.mxu0 0.0
    %69 = vmatpush1.msra.mxu0 0.0
    %70 = vmatprep.subr.mxu0 0.0
    %71 = vmatpush1.msra.mxu0 0.0
    %72 = vmatprep.subr.mxu0 0.0
    %73 = vmatpush1.msra.mxu0 0.0
    %74 = vmatprep.subr.mxu0 0.0
    %75 = vmatpush1.msra.mxu0 0.0
    %76 = vmatprep.subr.mxu0 0.0
    %77 = vmatpush1.msra.mxu0 0.0
    %78 = vmatprep.subr.mxu0 0.0
    %79 = vmatpush1.msra.mxu0 0.0
    %80 = vmatprep.subr.mxu0 0.0
    %81 = vmatpush1.msra.mxu0 0.0
    %82 = vmatprep.subr.mxu0 0.0
    %83 = vmatpush1.msra.mxu0 0.0
    %84 = vmatprep.subr.mxu0 0.0
    %85 = vmatpush1.msra.mxu0 0.0
    %86 = vmatprep.subr.mxu0 0.0
    %87 = vmatpush1.msra.mxu0 0.0
    %88 = vmatprep.subr.mxu0 0.0
    %89 = vmatpush1.msra.mxu0 0.0
    %90 = vmatprep.subr.mxu0 0.0
    %91 = vmatpush1.msra.mxu0 0.0
    %92 = vmatprep.subr.mxu0 0.0
    %93 = vmatpush1.msra.mxu0 0.0
    %94 = vmatprep.subr.mxu0 0.0
    %95 = vmatpush1.msra.mxu0 0.0
    %96 = vmatprep.subr.mxu0 0.0
    %97 = vmatpush1.msra.mxu0 0.0
    %98 = vmatprep.subr.mxu0 0.0
    %99 = vmatpush1.msra.mxu0 0.0
    %100 = vmatprep.subr.mxu0 0.0
    %101 = vmatpush1.msra.mxu0 0.0
    %102 = vmatprep.subr.mxu0 0.0
    %103 = vmatpush1.msra.mxu0 0.0
    %104 = vmatprep.subr.mxu0 0.0
    %105 = vmatpush1.msra.mxu0 0.0
    %106 = vmatprep.mubr.f32.mxu0 0.0
    %107 = vmatmul.mubr.f32.gmra.mrb[0].mxu0 %v37
    %v108 = vpop.f32.mrb[0].mxu0
    %v109 = vadd.f32 %v33, %v108
    %v110 = vpop.f32.mrb[0].mxu0
    %111 = vmatprep.mubr.f32.mxu0 0.0
    %112 = vmatmul.mubr.f32.gmra.mrb[0].mxu0 %v40
    %v113 = vpop.f32.mrb[0].mxu0
    %v114 = vadd.f32 %v33, %v113
    %v115 = vpop.f32.mrb[0].mxu0
    %116 = vdwg.mxu0
    %v117 = vtanh.pop %v109
    %v118 = vtanh.pop %v114
    %v119 = vld [vmem:[%s3] sm:$0x1]
    %v121 = vlaneseq
    %v122 = vshrl.u32 %v121, 7
    %v123 = vsub.s32 0, %v122
    %v124 = vrot.slane %v119, %v123
    %v126 = vmul.f32 %v117, %v124
    %v127 = vmul.f32 %v118, %v124
    %128 = vadd.xlane.f32.xlu0 %v126
    %v129 = vpop.xlane.xlu0 %128
    %130 = vadd.xlane.f32.xlu0 %v127
    %v131 = vpop.xlane.xlu0 %130
    %v132 = vrot.slane %v129, 4
    %v133 = vmax.f32 %v129, %v132
    %v134 = vrot.slane %v133, 2
    %v135 = vmax.f32 %v133, %v134
    %v136 = vrot.slane %v135, 1
    %v137 = vmax.f32 %v135, %v136
    %v138 = vrot.slane %v131, 4
    %v139 = vmax.f32 %v131, %v138
    %v140 = vrot.slane %v139, 2
    %v141 = vmax.f32 %v139, %v140
    %v142 = vrot.slane %v141, 1
    %v143 = vmax.f32 %v141, %v142
    %v144 = vsub.f32 %v129, %v137
    %v145 = vsub.f32 %v131, %v143
    %v146 = vmul.f32 %v144, 1.442695
    %v147 = vpow.pop %v146
    %v148 = vmul.f32 %v145, 1.442695
    %v149 = vpow.pop %v148
    %v150 = vrot.slane %v147, 4
    %v151 = vadd.f32 %v147, %v150
    %v152 = vrot.slane %v151, 2
    %v153 = vadd.f32 %v151, %v152
    %v154 = vrot.slane %v153, 1
    %v155 = vadd.f32 %v153, %v154
    %v156 = vrot.slane %v149, 4
    %v157 = vadd.f32 %v149, %v156
    %v158 = vrot.slane %v157, 2
    %v159 = vadd.f32 %v157, %v158
    %v160 = vrot.slane %v159, 1
    %v161 = vadd.f32 %v159, %v160
    %v162 = vrcp.pop %v155
    %v163 = vmul.f32 %v147, %v162
    %v164 = vrcp.pop %v161
    %v165 = vmul.f32 %v149, %v164
    %v166 = vmul.f32 %v18, %v163
    %v167 = vmul.f32 %v19, %v165
    %v168 = vsel %vm35, %v166, 0.0
    %v169 = vrot.slane %v168, 4
    %v170 = vadd.f32 %v168, %v169
    %v171 = vrot.slane %v170, 2
    %v172 = vadd.f32 %v170, %v171
    %v173 = vrot.slane %v172, 1
    %v174 = vadd.f32 %v172, %v173
    %v175 = vsel %vm35, %v167, 0.0
    %v176 = vrot.slane %v175, 4
    %v177 = vadd.f32 %v175, %v176
    %v178 = vrot.slane %v177, 2
    %v179 = vadd.f32 %v177, %v178
    %v180 = vrot.slane %v179, 1
    %v181 = vadd.f32 %v179, %v180
    %vm184 = vcmask 1041409
    %v185 = vsel %vm184, %v181, %v174
    %vm187 = vcmask 517120
    %188 = vst.msk [vmem:[#allocation2] sm:$0x3] %vm187, %v185
    // Predicated region
    $region18: #{soft_attention.1} parent=1 // pred_check
      _
    $region19: #{soft_attention.1} parent=1 // pred_check_branch
      %190 = sbr.rel (0) target = $region21
    $region20: #{soft_attention.1} parent=1 // pred_region
      %s192 = ssub.s32 32, 32
      %193 = vsyncadd [#allocation3], %s192
      %s195 = sshll.u32 [#allocation2], 4
      %s196 = int_to_ptr.vmem [resolvable:$true] %s195
      %198 = dma.vmem_to_hbm [thread:$0]  %s196, 32, %s4, [#allocation3]
    $region21: #{soft_attention.1} parent=1 // pred_fallthru
      _
    // Predicated region
    $region22: #{soft_attention.1} parent=1 // pred_check
      _
    $region23: #{soft_attention.1} parent=1 // pred_check_branch
      %200 = sbr.rel (0) target = $region25
    $region24: #{soft_attention.1} parent=1 // pred_region
      %201 = dma.done [#allocation3], 32
    $region25: #{soft_attention.1} parent=1 // pred_fallthru
      _
    %202 = vsyncpa [#allocation3], 1

</llo_original>
